<compile_context>
chip_gen: v6e
topology: v6e:2x2x1
jax: 0.10.0
libtpu: 0.0.40
codegen_flags: <defaults>
</compile_context>

<pallas_src>
import functools

import jax
import jax.numpy as jnp
from jax.experimental import pallas as pl
from jax.experimental.pallas import tpu as pltpu


# ----------------------------------------------------------------------------
# small helpers
# ----------------------------------------------------------------------------
def _round_up(x, m):
    return ((x + m - 1) // m) * m


def _to_nhwc(x):
    return jnp.transpose(x, (0, 2, 3, 1))


def _pick_rows(M):
    """Block rows for (M, C) slabs: prefer a divisor of M (no padding)."""
    for t in (512, 256, 128):
        if M % t == 0:
            return t, M
    if M <= 1024:
        return M, M                       # single full block (no padding)
    return 256, _round_up(M, 256)


# ----------------------------------------------------------------------------
# Pallas kernel bodies
# ----------------------------------------------------------------------------
def _matmul_bias_act_kernel(act, a_ref, b_ref, bias_ref, o_ref):
    """bf16 x bf16 -> f32 MXU matmul (full K in one step), bias + activation."""
    r = jnp.dot(a_ref[...], b_ref[...], preferred_element_type=jnp.float32)
    r = r + bias_ref[...]
    if act == "relu":
        r = jnp.maximum(r, 0.0)
    elif act == "lrelu":
        r = jnp.where(r >= 0, r, 0.2 * r)
    o_ref[...] = r.astype(o_ref.dtype)


def _bn_stats_kernel(x_ref, s_ref, q_ref):
    """Per-channel sum and sum-of-squares in one pass (grid-accumulated)."""
    @pl.when(pl.program_id(0) == 0)
    def _():
        s_ref[...] = jnp.zeros_like(s_ref)
        q_ref[...] = jnp.zeros_like(q_ref)
    v = x_ref[...].astype(jnp.float32)
    s_ref[...] += jnp.sum(v, axis=0, keepdims=True)
    q_ref[...] += jnp.sum(v * v, axis=0, keepdims=True)


def _affine_lrelu_kernel(x_ref, s_ref, t_ref, o_ref):
    """Per-channel scale/shift (folded BatchNorm affine) + LeakyReLU(0.2)."""
    y = x_ref[...] * s_ref[...] + t_ref[...]
    o_ref[...] = jnp.where(y >= 0, y, 0.2 * y)


def _lpips_feat_kernel(fx_ref, fy_ref, w_ref, o_ref):
    """Fused LPIPS per-feature term: channel-normalize, squared diff, 1x1 'lin'
    head, spatial SUM accumulated into a per-batch (1,1,1) resident output."""
    @pl.when(pl.program_id(1) == 0)
    def _():
        o_ref[...] = jnp.zeros_like(o_ref)
    fx = fx_ref[...].astype(jnp.float32)
    fy = fy_ref[...].astype(jnp.float32)
    nx = fx / (jnp.sqrt(jnp.sum(fx * fx, axis=-1, keepdims=True)) + 1e-10)
    ny = fy / (jnp.sqrt(jnp.sum(fy * fy, axis=-1, keepdims=True)) + 1e-10)
    d = (nx - ny) ** 2
    o_ref[...] += jnp.sum(d * w_ref[...]).reshape(1, 1, 1)


def _reduce_sum_kernel(elt_fn, x_ref, o_ref):
    @pl.when(pl.program_id(1) == 0)
    def _():
        o_ref[...] = jnp.zeros_like(o_ref)
    v = elt_fn(x_ref[...])
    o_ref[...] += jnp.sum(v.reshape(-1, 8, 128), axis=0, keepdims=True)


def _reduce_sum2_kernel(elt_fn, a_ref, b_ref, o_ref):
    @pl.when(pl.program_id(1) == 0)
    def _():
        o_ref[...] = jnp.zeros_like(o_ref)
    v = elt_fn(a_ref[...], b_ref[...])
    o_ref[...] += jnp.sum(v.reshape(-1, 8, 128), axis=0, keepdims=True)


# ----------------------------------------------------------------------------
# fused conv = bf16 im2col (NHWC, XLA glue) + Pallas matmul/bias/act kernel
# ----------------------------------------------------------------------------
_CONV_VMEM_BUDGET = 20 * 1024 * 1024       # double-buffered working-set target
_CONV_VMEM_LIMIT = 32 * 1024 * 1024        # scoped VMEM (fits v5e/v6e/v7x)


def _pick_tiles(M, Kp, Np, out_itemsize):
    """Full-K tiles; tm/tn as big as the VMEM budget allows (fills 256-wide MXU)."""
    tn = 512 if Np % 512 == 0 else (256 if Np % 256 == 0 else 128)
    while tn > 128 and 2 * Kp * tn * 2 > _CONV_VMEM_BUDGET // 2:
        tn //= 2
    if M < 128:
        tm = _round_up(M, 8)
        return tm, tn, tm
    tm = 512
    while tm > 128 and (M % tm != 0 or
                        2 * (tm * Kp + Kp * tn) * 2 + 2 * tm * tn * out_itemsize
                        > _CONV_VMEM_BUDGET):
        tm //= 2
    return tm, tn, _round_up(M, tm)


@functools.partial(jax.jit, static_argnames=("kh", "kw", "stride", "pad",
                                             "O", "K", "act", "out_dtype"))
def conv2d_fused(x, wmat, bias2d, *, kh, kw, stride, pad, O, K, act, out_dtype):
    """x: NHWC (f32 or bf16).  wmat: (Kp, Np) bf16 (padded at init).  bias2d: (1, Np) f32."""
    N, H, W, C = x.shape
    Kp, Np = wmat.shape
    # bf16 cast fused with the spatial zero-pad (single copy, half the traffic)
    xp = jnp.pad(x.astype(jnp.bfloat16), ((0, 0), (pad, pad), (pad, pad), (0, 0)))
    Ho = (H + 2 * pad - kh) // stride + 1
    Wo = (W + 2 * pad - kw) // stride + 1
    # TODO(synk): im2col is still materialized by XLA (folding the shifted
    #             kh*kw windows into the matmul BlockSpec is not expressible for
    #             the strided 4x4 convs); it is bf16 + NHWC, so half the traffic
    #             of the previous version and no transpose copy.
    cols = [xp[:, i:i + (Ho - 1) * stride + 1:stride,
                  j:j + (Wo - 1) * stride + 1:stride, :]
            for i in range(kh) for j in range(kw)]
    patches = jnp.stack(cols, axis=3).reshape(N * Ho * Wo, K)
    M = N * Ho * Wo

    tm, tn, Mp = _pick_tiles(M, Kp, Np, jnp.dtype(out_dtype).itemsize)
    if Mp != M or Kp != K:
        a = jnp.pad(patches, ((0, Mp - M), (0, Kp - K)))   # single fused pad
    else:
        a = patches

    out = pl.pallas_call(
        functools.partial(_matmul_bias_act_kernel, act),
        out_shape=jax.ShapeDtypeStruct((Mp, Np), out_dtype),
        grid=(Mp // tm, Np // tn),
        in_specs=[pl.BlockSpec((tm, Kp), lambda i, j: (i, 0)),
                  pl.BlockSpec((Kp, tn), lambda i, j: (0, j)),
                  pl.BlockSpec((1, tn), lambda i, j: (0, j))],
        out_specs=pl.BlockSpec((tm, tn), lambda i, j: (i, j)),
        compiler_params=pltpu.CompilerParams(
            dimension_semantics=("parallel", "parallel"),
            vmem_limit_bytes=_CONV_VMEM_LIMIT),
    )(a, wmat, bias2d)
    if Mp != M or Np != O:
        out = out[:M, :O]
    return out.reshape(N, Ho, Wo, O)


def conv_pallas(x, layer, act, out_dtype=jnp.float32):
    return conv2d_fused(x, layer['wmat'], layer['bias2d'],
                        kh=layer['kh'], kw=layer['kw'], stride=layer['stride'],
                        pad=layer['pad'], O=layer['O'], K=layer['K'],
                        act=act, out_dtype=out_dtype)


def conv_pallas_bf16(x, layer, act):
    return conv_pallas(x, layer, act, out_dtype=jnp.bfloat16)


def conv_ref(x, layer, act):
    """Plain-JAX NHWC reference conv (used only for the jax.grad adaptive-weight path)."""
    y = jax.lax.conv_general_dilated(
        x, layer['w'], (layer['stride'], layer['stride']),
        [(layer['pad'], layer['pad']), (layer['pad'], layer['pad'])],
        dimension_numbers=("NHWC", "OIHW", "NHWC"),
        precision=jax.lax.Precision.HIGHEST)
    if layer['b'] is not None:
        y = y + layer['b'].reshape(1, 1, 1, -1)
    if act == "relu":
        y = jnp.maximum(y, 0.0)
    elif act == "lrelu":
        y = jnp.where(y >= 0, y, 0.2 * y)
    return y


# ----------------------------------------------------------------------------
# BatchNorm (training stats) + LeakyReLU: one Pallas stats pass + one affine pass
# ----------------------------------------------------------------------------
@jax.jit
def bn_lrelu_pallas(x, gamma, beta):
    eps = 1e-5
    N, H, W, C = x.shape
    M = N * H * W
    bm, Mp = _pick_rows(M)
    slab = x.reshape(M, C)
    if Mp != M:
        slab = jnp.pad(slab, ((0, Mp - M), (0, 0)))   # zero rows: sums unaffected

    s, q = pl.pallas_call(
        _bn_stats_kernel,
        out_shape=(jax.ShapeDtypeStruct((1, C), jnp.float32),
                   jax.ShapeDtypeStruct((1, C), jnp.float32)),
        grid=(Mp // bm,),
        in_specs=[pl.BlockSpec((bm, C), lambda i: (i, 0))],
        out_specs=(pl.BlockSpec((1, C), lambda i: (0, 0)),
                   pl.BlockSpec((1, C), lambda i: (0, 0))),
        compiler_params=pltpu.CompilerParams(dimension_semantics=("arbitrary",)),
    )(slab)

    mean = s[0] / M
    var = q[0] / M - mean * mean              # biased, matches BN training mode
    scale = gamma / jnp.sqrt(var + eps)
    shift = beta - mean * scale

    out = pl.pallas_call(
        _affine_lrelu_kernel,
        out_shape=jax.ShapeDtypeStruct((Mp, C), jnp.float32),
        grid=(Mp // bm,),
        in_specs=[pl.BlockSpec((bm, C), lambda i: (i, 0)),
                  pl.BlockSpec((1, C), lambda i: (0, 0)),
                  pl.BlockSpec((1, C), lambda i: (0, 0))],
        out_specs=pl.BlockSpec((bm, C), lambda i: (i, 0)),
        compiler_params=pltpu.CompilerParams(dimension_semantics=("parallel",)),
    )(slab, scale.reshape(1, C), shift.reshape(1, C))
    return out[:M].reshape(N, H, W, C)


def bn_lrelu_ref(x, gamma, beta, eps=1e-5):
    mean = jnp.mean(x, axis=(0, 1, 2), keepdims=True)
    var = jnp.var(x, axis=(0, 1, 2), keepdims=True)
    y = (x - mean) / jnp.sqrt(var + eps) * gamma.reshape(1, 1, 1, -1) \
        + beta.reshape(1, 1, 1, -1)
    return jnp.where(y >= 0, y, 0.2 * y)


# ----------------------------------------------------------------------------
# tiled Pallas mean reductions ((1,8,128) vector partial accumulator)
# ----------------------------------------------------------------------------
_RED_BR = 1024      # up to 1024 x 128 f32 blocks (~85% of HBM roofline)


def _reduce_plan(n):
    rows_needed = max(1, -(-n // 128))
    br = min(_RED_BR, _round_up(rows_needed, 8))
    nsplit = 2 if rows_needed >= 4 * br else 1     # 2 partials -> both v7x cores
    rows = _round_up(rows_needed, br * nsplit)
    return nsplit, br, rows


def _slab(x, rows, pad_value):
    flat = x.astype(jnp.float32).reshape(-1)
    n = flat.shape[0]
    if rows * 128 != n:
        flat = jnp.pad(flat, (0, rows * 128 - n), constant_values=pad_value)
    return flat.reshape(rows, 128)


def _elt_identity(x):
    return x


def _elt_absdiff(a, b):
    return jnp.abs(a - b)


def _elt_hinge_real(x):
    return jnp.maximum(1.0 - x, 0.0)


def _elt_hinge_fake(x):
    return jnp.maximum(1.0 + x, 0.0)


def _elt_softplus_neg(x):
    return jax.nn.softplus(-x)


def _elt_softplus_pos(x):
    return jax.nn.softplus(x)


@functools.partial(jax.jit, static_argnames=("elt_fn", "pad_value"))
def _pallas_reduce_mean(x, elt_fn, pad_value):
    n = x.size
    nsplit, br, rows = _reduce_plan(n)
    slab = _slab(x, rows, pad_value)
    nblocks = rows // (br * nsplit)
    parts = pl.pallas_call(
        functools.partial(_reduce_sum_kernel, elt_fn),
        out_shape=jax.ShapeDtypeStruct((nsplit, 8, 128), jnp.float32),
        grid=(nsplit, nblocks),
        in_specs=[pl.BlockSpec((br, 128), lambda c, i: (c * nblocks + i, 0))],
        out_specs=pl.BlockSpec((1, 8, 128), lambda c, i: (c, 0, 0)),
        compiler_params=pltpu.CompilerParams(
            dimension_semantics=("parallel", "arbitrary")),
    )(slab)
    return jnp.sum(parts) / n


@functools.partial(jax.jit, static_argnames=("elt_fn", "pad_value"))
def _pallas_reduce_mean2(a, b, elt_fn, pad_value):
    n = a.size
    nsplit, br, rows = _reduce_plan(n)
    sa = _slab(a, rows, pad_value)
    sb = _slab(b, rows, pad_value)
    nblocks = rows // (br * nsplit)
    parts = pl.pallas_call(
        functools.partial(_reduce_sum2_kernel, elt_fn),
        out_shape=jax.ShapeDtypeStruct((nsplit, 8, 128), jnp.float32),
        grid=(nsplit, nblocks),
        in_specs=[pl.BlockSpec((br, 128), lambda c, i: (c * nblocks + i, 0)),
                  pl.BlockSpec((br, 128), lambda c, i: (c * nblocks + i, 0))],
        out_specs=pl.BlockSpec((1, 8, 128), lambda c, i: (c, 0, 0)),
        compiler_params=pltpu.CompilerParams(
            dimension_semantics=("parallel", "arbitrary")),
    )(sa, sb)
    return jnp.sum(parts) / n


def pallas_mean(x):
    return _pallas_reduce_mean(x, elt_fn=_elt_identity, pad_value=0.0)


def pallas_l1_mean(a, b):
    return _pallas_reduce_mean2(a, b, elt_fn=_elt_absdiff, pad_value=0.0)


# ----------------------------------------------------------------------------
# loss helpers (mirroring the reference module)
# ----------------------------------------------------------------------------
def adopt_weight(weight, global_step, threshold=0, value=0.0):
    if isinstance(global_step, (int, float)):
        return value if global_step < threshold else weight
    return jnp.where(global_step < threshold, value, weight)


def hinge_d_loss(logits_real, logits_fake):
    # pad sentinels make padded elements contribute exactly 0 to the sums
    loss_real = _pallas_reduce_mean(logits_real, elt_fn=_elt_hinge_real, pad_value=1e9)
    loss_fake = _pallas_reduce_mean(logits_fake, elt_fn=_elt_hinge_fake, pad_value=-1e9)
    return 0.5 * (loss_real + loss_fake)


def vanilla_d_loss(logits_real, logits_fake):
    return 0.5 * (_pallas_reduce_mean(logits_real, elt_fn=_elt_softplus_neg, pad_value=1e9) +
                  _pallas_reduce_mean(logits_fake, elt_fn=_elt_softplus_pos, pad_value=-1e9))


# ----------------------------------------------------------------------------
# sub-networks (structure shared by Pallas path and plain-JAX grad path)
# ----------------------------------------------------------------------------
VGG_CFG = [64, 64, 'M', 128, 128, 'M', 256, 256, 256, 'M', 512, 512, 512, 'M',
           512, 512, 512]
LPIPS_CHNS = [64, 128, 256, 512, 512]
_TAKE_RELUS = {2, 4, 7, 10, 13}     # relu1_2, relu2_2, relu3_3, relu4_3, relu5_3

_LPIPS_SHIFT = jnp.array([-0.030, -0.088, -0.188], jnp.float32).reshape(1, 1, 1, 3)
_LPIPS_SCALE = jnp.array([0.458, 0.448, 0.450], jnp.float32).reshape(1, 1, 1, 3)


def maxpool2x2_nhwc(x):
    N, H, W, C = x.shape
    return x.reshape(N, H // 2, 2, W // 2, 2, C).max(axis=(2, 4))


def discriminator_forward(p, x_nhwc, conv_fn, bn_act_fn):
    """NLayerDiscriminator(input_nc=3, ndf=64, n_layers=3), BatchNorm variant."""
    h = conv_fn(x_nhwc, p['disc'][0], 'lrelu')
    for i in (1, 2, 3):
        h = conv_fn(h, p['disc'][i], 'none')
        h = bn_act_fn(h, p['disc'][i]['gamma'], p['disc'][i]['beta'])
    return conv_fn(h, p['disc'][4], 'none')


def _vgg_features(p, x_nhwc, conv_fn):
    feats, h, ci = [], x_nhwc, 0
    for v in VGG_CFG:
        if v == 'M':
            h = maxpool2x2_nhwc(h)
        else:
            h = conv_fn(h, p['vgg'][ci], 'relu')
            ci += 1
            if ci in _TAKE_RELUS:
                feats.append(h)
    return feats


@jax.jit
def lpips_feat_score(fx, fy, w_lin):
    """Per-feature LPIPS term: fused normalize+diff^2+lin+spatial-sum; returns (N,)."""
    N, H, W, C = fx.shape
    M = H * W
    bm, Mp = _pick_rows(M)
    ax = fx.reshape(N, M, C)
    ay = fy.reshape(N, M, C)
    if Mp != M:
        ax = jnp.pad(ax, ((0, 0), (0, Mp - M), (0, 0)))
        ay = jnp.pad(ay, ((0, 0), (0, Mp - M), (0, 0)))
    sums = pl.pallas_call(
        _lpips_feat_kernel,
        out_shape=jax.ShapeDtypeStruct((N, 1, 1), jnp.float32),
        grid=(N, Mp // bm),
        in_specs=[pl.BlockSpec((None, bm, C), lambda n, i: (n, i, 0)),
                  pl.BlockSpec((None, bm, C), lambda n, i: (n, i, 0)),
                  pl.BlockSpec((1, C), lambda n, i: (0, 0))],
        out_specs=pl.BlockSpec((1, 1, 1), lambda n, i: (n, 0, 0)),
        compiler_params=pltpu.CompilerParams(
            dimension_semantics=("parallel", "arbitrary")),
    )(ax, ay, w_lin)
    return sums[:, 0, 0] / M


def lpips_pallas(p, x_nhwc, y_nhwc):
    """LPIPS with deterministic synthetic VGG16 backbone.  Returns (N,1,1,1)."""
    n = x_nhwc.shape[0]
    xin = (x_nhwc - _LPIPS_SHIFT) / _LPIPS_SCALE
    yin = (y_nhwc - _LPIPS_SHIFT) / _LPIPS_SCALE
    # batched backbone: one bf16 VGG pass over concat([x, y]) instead of two
    feats = _vgg_features(p, jnp.concatenate([xin, yin], axis=0), conv_pallas_bf16)
    val = jnp.zeros((n,), jnp.float32)
    for k, f in enumerate(feats):
        val = val + lpips_feat_score(f[:n], f[n:], p['lin'][k])
    return val.reshape(n, 1, 1, 1)


def lpips_ref(p, x_nhwc, y_nhwc):
    n = x_nhwc.shape[0]
    xin = (x_nhwc - _LPIPS_SHIFT) / _LPIPS_SCALE
    yin = (y_nhwc - _LPIPS_SHIFT) / _LPIPS_SCALE
    feats = _vgg_features(p, jnp.concatenate([xin, yin], axis=0), conv_ref)
    val = jnp.zeros((n,), jnp.float32)
    for k, f in enumerate(feats):
        fx, fy = f[:n], f[n:]
        nx = fx / (jnp.sqrt(jnp.sum(fx ** 2, axis=-1, keepdims=True)) + 1e-10)
        ny = fy / (jnp.sqrt(jnp.sum(fy ** 2, axis=-1, keepdims=True)) + 1e-10)
        d = (nx - ny) ** 2
        lin = jnp.sum(d * p['lin'][k].reshape(1, 1, 1, -1), axis=-1)
        val = val + jnp.mean(lin, axis=(1, 2))
    return val.reshape(n, 1, 1, 1)


# ----------------------------------------------------------------------------
# module
# ----------------------------------------------------------------------------
class VQLPIPSWithDiscriminatorPallas:
    def __init__(self, disc_start, params, codebook_weight=1.0, pixelloss_weight=1.0,
                 disc_factor=1.0, disc_weight=1.0, perceptual_weight=1.0,
                 disc_conditional=False, disc_loss='hinge'):
        assert disc_loss in ('hinge', 'vanilla')
        self.params = params
        self.codebook_weight = codebook_weight
        self.pixel_weight = pixelloss_weight     # stored but unused (matches reference)
        self.perceptual_weight = perceptual_weight
        self.discriminator_iter_start = disc_start
        self.disc_loss = hinge_d_loss if disc_loss == 'hinge' else vanilla_d_loss
        self.disc_factor = disc_factor
        self.discriminator_weight = disc_weight
        self.disc_conditional = disc_conditional

    # TODO(synk): torch.autograd.grad has no Pallas equivalent; the adaptive-weight
    #             grads are taken with jax.grad over a plain-JAX (lax.conv) replica
    #             of the same math/params (pallas_call here has no VJP).
    def calculate_adaptive_weight(self, nll_fn, g_fn, last_layer):
        nll_grads = jax.grad(nll_fn)(last_layer)
        g_grads = jax.grad(g_fn)(last_layer)
        d_weight = jnp.linalg.norm(nll_grads.reshape(-1)) / \
                   (jnp.linalg.norm(g_grads.reshape(-1)) + 1e-4)
        d_weight = jnp.clip(d_weight, 0.0, 1e4)
        return d_weight * self.discriminator_weight

    def __call__(self, codebook_loss, inputs, reconstructions, optimizer_idx, global_step,
                 last_layer=None, recon_fn=None, cond=None, split='train'):
        p = self.params
        x_nhwc = _to_nhwc(inputs)
        r_nhwc = _to_nhwc(reconstructions)

        # mean(|x-r| + w*p_loss_broadcast) == mean|x-r| + w*mean(p_loss)  (exact)
        rec_l1_mean = pallas_l1_mean(inputs, reconstructions)
        if self.perceptual_weight > 0:
            p_loss = lpips_pallas(p, x_nhwc, r_nhwc)          # (N,1,1,1)
            p_loss_mean = jnp.mean(p_loss)
            nll_loss = rec_l1_mean + self.perceptual_weight * p_loss_mean
        else:
            p_loss = jnp.array([0.0], jnp.float32)
            p_loss_mean = jnp.mean(p_loss)
            nll_loss = rec_l1_mean
        rec_loss_mean = nll_loss

        if optimizer_idx == 0:
            # ---- generator update ----
            if cond is None:
                assert not self.disc_conditional
                din_fake = r_nhwc
            else:
                assert self.disc_conditional
                din_fake = jnp.concatenate([r_nhwc, _to_nhwc(cond)], axis=-1)
            logits_fake = discriminator_forward(p, din_fake, conv_pallas, bn_lrelu_pallas)
            g_loss = -pallas_mean(logits_fake)

            if last_layer is not None and recon_fn is not None:
                def _nll_ref(w):
                    rec = recon_fn(w)
                    v = jnp.mean(jnp.abs(inputs - rec))
                    if self.perceptual_weight > 0:
                        v = v + self.perceptual_weight * \
                            jnp.mean(lpips_ref(p, x_nhwc, _to_nhwc(rec)))
                    return v

                def _g_ref(w):
                    rec = recon_fn(w)
                    din = _to_nhwc(rec) if cond is None else \
                        jnp.concatenate([_to_nhwc(rec), _to_nhwc(cond)], axis=-1)
                    return -jnp.mean(discriminator_forward(p, din, conv_ref, bn_lrelu_ref))

                d_weight = self.calculate_adaptive_weight(_nll_ref, _g_ref, last_layer)
            else:
                # mirrors the `except RuntimeError` (eval) branch of the reference
                d_weight = jnp.array(0.0, jnp.float32)

            disc_factor = adopt_weight(self.disc_factor, global_step,
                                       threshold=self.discriminator_iter_start)
            loss = nll_loss + d_weight * disc_factor * g_loss \
                + self.codebook_weight * jnp.mean(codebook_loss)
            log = {f"{split}/total_loss": jnp.mean(loss),
                   f"{split}/quant_loss": jnp.mean(codebook_loss),
                   f"{split}/nll_loss": jnp.mean(nll_loss),
                   f"{split}/rec_loss": rec_loss_mean,
                   f"{split}/p_loss": p_loss_mean,
                   f"{split}/d_weight": d_weight,
                   f"{split}/disc_factor": jnp.asarray(disc_factor, jnp.float32),
                   f"{split}/g_loss": jnp.mean(g_loss)}
            return loss, log

        if optimizer_idx == 1:
            # ---- discriminator update ----
            if cond is None:
                din_real, din_fake = x_nhwc, r_nhwc
            else:
                c_nhwc = _to_nhwc(cond)
                din_real = jnp.concatenate([x_nhwc, c_nhwc], axis=-1)
                din_fake = jnp.concatenate([r_nhwc, c_nhwc], axis=-1)
            logits_real = discriminator_forward(p, din_real, conv_pallas, bn_lrelu_pallas)
            logits_fake = discriminator_forward(p, din_fake, conv_pallas, bn_lrelu_pallas)
            disc_factor = adopt_weight(self.disc_factor, global_step,
                                       threshold=self.discriminator_iter_start)
            d_loss = disc_factor * self.disc_loss(logits_real, logits_fake)
            log = {f"{split}/disc_loss": jnp.mean(d_loss),
                   f"{split}/logits_real": pallas_mean(logits_real),
                   f"{split}/logits_fake": pallas_mean(logits_fake)}
            return d_loss, log


# ----------------------------------------------------------------------------
# deterministic parameter init (synthetic weights; no checkpoint loading)
# weights are reshaped / K,O-padded / bf16-cast ONCE here.
# ----------------------------------------------------------------------------
def _prep_conv(w_oihw, b, stride, pad):
    O, C, kh, kw = w_oihw.shape
    K = kh * kw * C
    Kp = _round_up(K, 128)
    Np = _round_up(O, 128)
    wmat = jnp.transpose(w_oihw, (2, 3, 1, 0)).reshape(K, O)   # (dy,dx,c, o)
    wmat_p = jnp.zeros((Kp, Np), jnp.float32).at[:K, :O].set(wmat).astype(jnp.bfloat16)
    bvec = jnp.zeros((Np,), jnp.float32)
    if b is not None:
        bvec = bvec.at[:O].set(b)
    return dict(w=w_oihw, b=b, wmat=wmat_p, bias2d=bvec.reshape(1, Np),
                kh=int(kh), kw=int(kw), stride=int(stride), pad=int(pad),
                O=int(O), K=int(K))


def init_params(key):
    keys = iter(jax.random.split(key, 64))

    def nrm(shape, std):
        return std * jax.random.normal(next(keys), shape, jnp.float32)

    p = {}
    # NLayerDiscriminator(input_nc=3, ndf=64, n_layers=3) after weights_init:
    # conv weight ~ N(0, 0.02); BatchNorm weight ~ N(1, 0.02), bias = 0.
    disc = [_prep_conv(nrm((64, 3, 4, 4), 0.02), jnp.zeros((64,), jnp.float32), 2, 1)]
    for cin, cout, s in ((64, 128, 2), (128, 256, 2), (256, 512, 1)):
        layer = _prep_conv(nrm((cout, cin, 4, 4), 0.02), None, s, 1)
        layer['gamma'] = 1.0 + nrm((cout,), 0.02)
        layer['beta'] = jnp.zeros((cout,), jnp.float32)
        disc.append(layer)
    disc.append(_prep_conv(nrm((1, 512, 4, 4), 0.02), jnp.zeros((1,), jnp.float32), 1, 1))
    p['disc'] = disc

    # LPIPS: VGG16 backbone + 1x1 lin heads, deterministic synthetic init (NOT pretrained).
    vgg, cin = [], 3
    for v in VGG_CFG:
        if v == 'M':
            continue
        vgg.append(_prep_conv(nrm((v, cin, 3, 3), (2.0 / (cin * 9)) ** 0.5),
                              jnp.zeros((v,), jnp.float32), 1, 1))
        cin = v
    p['vgg'] = vgg
    p['lin'] = [jnp.abs(nrm((1, c), 0.1)) for c in LPIPS_CHNS]
    return p


if __name__ == "__main__":
    key = jax.random.PRNGKey(0)
    k_in, k_h, k_w, k_p = jax.random.split(key, 4)
    # 32x32 so the 3-layer PatchGAN discriminator produces a non-empty logits map.
    N, C, H, W = 2, 3, 32, 32
    params = init_params(k_p)

    inputs = 0.5 * jax.random.normal(k_in, (N, C, H, W), jnp.float32)
    # Synthetic "decoder last layer": reconstructions depend on `last_layer` so the
    # adaptive d_weight (grad w.r.t. last_layer) has a well-defined JAX equivalent.
    h_dec = 0.5 * jax.random.normal(k_h, (N, 16, H, W), jnp.float32)
    last_layer = 0.05 * jax.random.normal(k_w, (3, 16, 3, 3), jnp.float32)
    last_b = jnp.zeros((3,), jnp.float32)

    def recon_fn(w):
        y = jax.lax.conv_general_dilated(
            h_dec, w, (1, 1), [(1, 1), (1, 1)],
            dimension_numbers=("NCHW", "OIHW", "NCHW"),
            precision=jax.lax.Precision.HIGHEST)
        return y + last_b.reshape(1, 3, 1, 1)

    reconstructions = recon_fn(last_layer)
    codebook_loss = jnp.array(0.1, jnp.float32)

    module = VQLPIPSWithDiscriminatorPallas(disc_start=0, params=params)

    # Cross-check: fused bf16 Pallas conv stack vs f32 lax.conv reference on the
    # discriminator (relative tolerance accounts for bf16 MXU operands).
    x_nhwc = _to_nhwc(inputs)
    lp = discriminator_forward(params, x_nhwc, conv_pallas, bn_lrelu_pallas)
    lr = discriminator_forward(params, x_nhwc, conv_ref, bn_lrelu_ref)
    err = float(jnp.max(jnp.abs(lp - lr)))
    ref = float(jnp.max(jnp.abs(lr)))
    assert err < 1e-1 * (ref + 1.0), f"Pallas conv stack mismatch: {err} (ref max {ref})"

    loss_g, log_g = module(codebook_loss, inputs, reconstructions, optimizer_idx=0,
                           global_step=1, last_layer=last_layer, recon_fn=recon_fn)
    loss_d, log_d = module(codebook_loss, inputs, reconstructions, optimizer_idx=1,
                           global_step=1)
    jax.block_until_ready((loss_g, log_g, loss_d, log_d))
    assert bool(jnp.isfinite(loss_g)) and bool(jnp.isfinite(loss_d))
    print("KERNEL_OK")
</pallas_src>

<mosaic_0001>
module attributes {stable_mosaic.version = 11 : i64} {
  func.func @_matmul_bias_act_kernel(%arg0: i32, %arg1: i32, %arg2: memref<512x128xbf16, #tpu.memory_space<vmem>>, %arg3: memref<128x128xbf16, #tpu.memory_space<vmem>>, %arg4: memref<1x128xf32, #tpu.memory_space<vmem>>, %arg5: memref<512x128xf32, #tpu.memory_space<vmem>>) attributes {dimension_semantics = [#tpu.dimension_semantics<parallel>, #tpu.dimension_semantics<parallel>], iteration_bounds = array<i64: 1, 1>, scalar_prefetch = 0 : i64, scratch_operands = 0 : i64, tpu.core_type = #tpu.core_type<tc>, window_params = [{transform_indices = @transform_0, window_bounds = array<i64: 512, 128>}, {transform_indices = @transform_1, window_bounds = array<i64: 128, 128>}, {transform_indices = @transform_2, window_bounds = array<i64: 1, 128>}, {transform_indices = @transform_3, window_bounds = array<i64: 512, 128>}]} {
    %c0 = arith.constant 0 : index
    %c0_0 = arith.constant 0 : index
    %0 = vector.load %arg2[%c0, %c0_0] : memref<512x128xbf16, #tpu.memory_space<vmem>>, vector<512x128xbf16>
    %c0_1 = arith.constant 0 : index
    %c0_2 = arith.constant 0 : index
    %1 = vector.load %arg3[%c0_1, %c0_2] : memref<128x128xbf16, #tpu.memory_space<vmem>>, vector<128x128xbf16>
    %cst = arith.constant dense<0.000000e+00> : vector<512x128xf32>
    %2 = tpu.matmul %0, %1, %cst {dimension_numbers = #tpu.dot_dimension_numbers<[1], [0], [0], [1], [0, 0, 1, 1], [], []>} : vector<512x128xbf16>, vector<128x128xbf16>, vector<512x128xf32> -> vector<512x128xf32>
    %c0_3 = arith.constant 0 : index
    %c0_4 = arith.constant 0 : index
    %3 = vector.load %arg4[%c0_3, %c0_4] : memref<1x128xf32, #tpu.memory_space<vmem>>, vector<1x128xf32>
    %4 = vector.broadcast %3 : vector<1x128xf32> to vector<512x128xf32>
    %5 = arith.addf %2, %4 : vector<512x128xf32>
    %cst_5 = arith.constant 0.000000e+00 : f32
    %6 = vector.broadcast %cst_5 : f32 to vector<512x128xf32>
    %7 = arith.cmpf oge, %5, %6 : vector<512x128xf32>
    %cst_6 = arith.constant 2.000000e-01 : f32
    %8 = vector.broadcast %cst_6 : f32 to vector<512x128xf32>
    %9 = arith.mulf %8, %5 : vector<512x128xf32>
    %10 = arith.select %7, %5, %9 : vector<512x128xi1>, vector<512x128xf32>
    %c0_7 = arith.constant 0 : index
    %c0_8 = arith.constant 0 : index
    %11 = vector.load %arg5[%c0_7, %c0_8] : memref<512x128xf32, #tpu.memory_space<vmem>>, vector<512x128xf32>
    tpu.vector_store %arg5[%c0_7, %c0_8], %10 {strides = array<i32>} : memref<512x128xf32, #tpu.memory_space<vmem>>, vector<512x128xf32>,
    return
  }
  func.func @transform_0(%arg0: i32, %arg1: i32) -> (i32, i32) {
    %c0_i32 = arith.constant 0 : i32
    %c0_i32_0 = arith.constant 0 : i32
    return %arg0, %c0_i32 : i32, i32
  }
  func.func @transform_1(%arg0: i32, %arg1: i32) -> (i32, i32) {
    %c0_i32 = arith.constant 0 : i32
    %c0_i32_0 = arith.constant 0 : i32
    return %c0_i32, %arg1 : i32, i32
  }
  func.func @transform_2(%arg0: i32, %arg1: i32) -> (i32, i32) {
    %c0_i32 = arith.constant 0 : i32
    %c0_i32_0 = arith.constant 0 : i32
    return %c0_i32, %arg1 : i32, i32
  }
  func.func @transform_3(%arg0: i32, %arg1: i32) -> (i32, i32) {
    %c0_i32 = arith.constant 0 : i32
    return %arg0, %arg1 : i32, i32
  }
}

</mosaic_0001>

<llo_original>
// kernel: conv2d_fused.1
$region0: #{conv2d_fused.1}
  #allocation0 [shape = 'u32[]', space=smem, size = 0x4, offset = 0x4, fixed_abs, tag = 'smem constant byte address 0x4 - core index']
  #allocation1 [shape = 'u32[144,128]{1,0:T(1,128)}', space=vmem, size = 0x12000, scoped, tag = 'internal scratch']
  %s0 = inlined_call_operand.vmem [shape: bf16[512,128], index: 0, kind: input, shape index: {}]
  %s1 = inlined_call_operand.vmem [shape: bf16[128,128], index: 1, kind: input, shape index: {}]
  %s2 = inlined_call_operand.vmem [shape: f32[1,128], index: 2, kind: input, shape index: {}]
  %s3 = inlined_call_operand.hbm [shape: f32[512,128], index: 3, kind: output, shape index: {}]
  %s4 = sld [smem:[#allocation0]]
  $region22: #{conv2d_fused.1} parent=0
    _
  %s6 = ssub.s32 1, %s4
  %s7 = scalar_select 0, %s6, %s4
  $region1: #{conv2d_fused.1} parent=0
    #allocation2 [shape = 'u8[262144]{0}', space=vmem, size = 0x40000, scoped, tag = 'output window, operand 0, single buffered']
    #allocation3 [shape = 's32[1]{0}', space=sflag, size = 0x4, scoped, tag = 'scoped memory for conv2d_fused.1']
    %8 = vsyncpa [#allocation3], 0
    // Predicated region
    $region2: #{conv2d_fused.1} parent=1 // pred_check
      _
    $region3: #{conv2d_fused.1} parent=1 // pred_check_branch
      %10 = sbr.rel (0) target = $region5
    $region4: #{conv2d_fused.1} parent=1 // pred_region
      _
    $region5: #{conv2d_fused.1} parent=1 // pred_fallthru
      _
    // Predicated region
    $region6: #{conv2d_fused.1} parent=1 // pred_check
      _
    $region7: #{conv2d_fused.1} parent=1 // pred_check_branch
      %12 = sbr.rel (0) target = $region9
    $region8: #{conv2d_fused.1} parent=1 // pred_region
      _
    $region9: #{conv2d_fused.1} parent=1 // pred_fallthru
      _
    // Predicated region
    $region10: #{conv2d_fused.1} parent=1 // pred_check
      _
    $region11: #{conv2d_fused.1} parent=1 // pred_check_branch
      %14 = sbr.rel (0) target = $region13
    $region12: #{conv2d_fused.1} parent=1 // pred_region
      _
    $region13: #{conv2d_fused.1} parent=1 // pred_fallthru
      _
    %v16 = vld [vmem:[%s0] sm:$0xf]
    %v17 = vld [vmem:[%s0 + $0x4] sm:$0xf]
    %v18 = vld [vmem:[%s0 + $0x8] sm:$0xf]
    %v19 = vld [vmem:[%s0 + $0xc] sm:$0xf]
    %v20 = vld [vmem:[%s0 + $0x10] sm:$0xf]
    %v21 = vld [vmem:[%s0 + $0x14] sm:$0xf]
    %v22 = vld [vmem:[%s0 + $0x18] sm:$0xf]
    %v23 = vld [vmem:[%s0 + $0x1c] sm:$0xf]
    %v24 = vld [vmem:[%s0 + $0x20] sm:$0xf]
    %v25 = vld [vmem:[%s0 + $0x24] sm:$0xf]
    %v26 = vld [vmem:[%s0 + $0x28] sm:$0xf]
    %v27 = vld [vmem:[%s0 + $0x2c] sm:$0xf]
    %v28 = vld [vmem:[%s0 + $0x30] sm:$0xf]
    %v29 = vld [vmem:[%s0 + $0x34] sm:$0xf]
    %v30 = vld [vmem:[%s0 + $0x38] sm:$0xf]
    %v31 = vld [vmem:[%s0 + $0x3c] sm:$0xf]
    %v32 = vld [vmem:[%s0 + $0x40] sm:$0xf]
    %v33 = vld [vmem:[%s0 + $0x44] sm:$0xf]
    %v34 = vld [vmem:[%s0 + $0x48] sm:$0xf]
    %v35 = vld [vmem:[%s0 + $0x4c] sm:$0xf]
    %v36 = vld [vmem:[%s0 + $0x50] sm:$0xf]
    %v37 = vld [vmem:[%s0 + $0x54] sm:$0xf]
    %v38 = vld [vmem:[%s0 + $0x58] sm:$0xf]
    %v39 = vld [vmem:[%s0 + $0x5c] sm:$0xf]
    %v40 = vld [vmem:[%s0 + $0x60] sm:$0xf]
    %v41 = vld [vmem:[%s0 + $0x64] sm:$0xf]
    %v42 = vld [vmem:[%s0 + $0x68] sm:$0xf]
    %v43 = vld [vmem:[%s0 + $0x6c] sm:$0xf]
    %v44 = vld [vmem:[%s0 + $0x70] sm:$0xf]
    %v45 = vld [vmem:[%s0 + $0x74] sm:$0xf]
    %v46 = vld [vmem:[%s0 + $0x78] sm:$0xf]
    %v47 = vld [vmem:[%s0 + $0x7c] sm:$0xf]
    %v48 = vld [vmem:[%s0 + $0x80] sm:$0xf]
    %v49 = vld [vmem:[%s0 + $0x84] sm:$0xf]
    %v50 = vld [vmem:[%s0 + $0x88] sm:$0xf]
    %v51 = vld [vmem:[%s0 + $0x8c] sm:$0xf]
    %v52 = vld [vmem:[%s0 + $0x90] sm:$0xf]
    %v53 = vld [vmem:[%s0 + $0x94] sm:$0xf]
    %v54 = vld [vmem:[%s0 + $0x98] sm:$0xf]
    %v55 = vld [vmem:[%s0 + $0x9c] sm:$0xf]
    %v56 = vld [vmem:[%s0 + $0xa0] sm:$0xf]
    %v57 = vld [vmem:[%s0 + $0xa4] sm:$0xf]
    %v58 = vld [vmem:[%s0 + $0xa8] sm:$0xf]
    %v59 = vld [vmem:[%s0 + $0xac] sm:$0xf]
    %v60 = vld [vmem:[%s0 + $0xb0] sm:$0xf]
    %v61 = vld [vmem:[%s0 + $0xb4] sm:$0xf]
    %v62 = vld [vmem:[%s0 + $0xb8] sm:$0xf]
    %v63 = vld [vmem:[%s0 + $0xbc] sm:$0xf]
    %v64 = vld [vmem:[%s0 + $0xc0] sm:$0xf]
    %v65 = vld [vmem:[%s0 + $0xc4] sm:$0xf]
    %v66 = vld [vmem:[%s0 + $0xc8] sm:$0xf]
    %v67 = vld [vmem:[%s0 + $0xcc] sm:$0xf]
    %v68 = vld [vmem:[%s0 + $0xd0] sm:$0xf]
    %v69 = vld [vmem:[%s0 + $0xd4] sm:$0xf]
    %v70 = vld [vmem:[%s0 + $0xd8] sm:$0xf]
    %v71 = vld [vmem:[%s0 + $0xdc] sm:$0xf]
    %v72 = vld [vmem:[%s0 + $0xe0] sm:$0xf]
    %v73 = vld [vmem:[%s0 + $0xe4] sm:$0xf]
    %v74 = vld [vmem:[%s0 + $0xe8] sm:$0xf]
    %v75 = vld [vmem:[%s0 + $0xec] sm:$0xf]
    %v76 = vld [vmem:[%s0 + $0xf0] sm:$0xf]
    %v77 = vld [vmem:[%s0 + $0xf4] sm:$0xf]
    %v78 = vld [vmem:[%s0 + $0xf8] sm:$0xf]
    %v79 = vld [vmem:[%s0 + $0xfc] sm:$0xf]
    %v80 = vld [vmem:[%s1] sm:$0xf]
    %v81 = vld [vmem:[%s1 + $0x4] sm:$0xf]
    %v82 = vld [vmem:[%s1 + $0x8] sm:$0xf]
    %v83 = vld [vmem:[%s1 + $0xc] sm:$0xf]
    %v84 = vld [vmem:[%s1 + $0x10] sm:$0xf]
    %v85 = vld [vmem:[%s1 + $0x14] sm:$0xf]
    %v86 = vld [vmem:[%s1 + $0x18] sm:$0xf]
    %v87 = vld [vmem:[%s1 + $0x1c] sm:$0xf]
    %v88 = vld [vmem:[%s1 + $0x20] sm:$0xf]
    %v89 = vld [vmem:[%s1 + $0x24] sm:$0xf]
    %v90 = vld [vmem:[%s1 + $0x28] sm:$0xf]
    %v91 = vld [vmem:[%s1 + $0x2c] sm:$0xf]
    %v92 = vld [vmem:[%s1 + $0x30] sm:$0xf]
    %v93 = vld [vmem:[%s1 + $0x34] sm:$0xf]
    %v94 = vld [vmem:[%s1 + $0x38] sm:$0xf]
    %v95 = vld [vmem:[%s1 + $0x3c] sm:$0xf]
    %v96 = vld [vmem:[%s2] sm:$0x1]
    %v98 = vlaneseq
    %v99 = vshrl.u32 %v98, 7
    %v100 = vsub.s32 0, %v99
    %v101 = vrot.slane %v96, %v100
    %v167 = vunpack.c.l.b16 %v16
    %v168 = vunpack.c.l.b16 %v17
    %v169 = vunpack.c.l.b16 %v18
    %v170 = vunpack.c.l.b16 %v19
    %v171 = vunpack.c.l.b16 %v20
    %v172 = vunpack.c.l.b16 %v21
    %v173 = vunpack.c.l.b16 %v22
    %v174 = vunpack.c.l.b16 %v23
    %v175 = vunpack.c.l.b16 %v24
    %v176 = vunpack.c.l.b16 %v25
    %v177 = vunpack.c.l.b16 %v26
    %v178 = vunpack.c.l.b16 %v27
    %v179 = vunpack.c.l.b16 %v28
    %v180 = vunpack.c.l.b16 %v29
    %v181 = vunpack.c.l.b16 %v30
    %v182 = vunpack.c.l.b16 %v31
    %v183 = vunpack.c.l.b16 %v32
    %v184 = vunpack.c.l.b16 %v33
    %v185 = vunpack.c.l.b16 %v34
    %v186 = vunpack.c.l.b16 %v35
    %v187 = vunpack.c.l.b16 %v36
    %v188 = vunpack.c.l.b16 %v37
    %v189 = vunpack.c.l.b16 %v38
    %v190 = vunpack.c.l.b16 %v39
    %v191 = vunpack.c.l.b16 %v40
    %v192 = vunpack.c.l.b16 %v41
    %v193 = vunpack.c.l.b16 %v42
    %v194 = vunpack.c.l.b16 %v43
    %v195 = vunpack.c.l.b16 %v44
    %v196 = vunpack.c.l.b16 %v45
    %v197 = vunpack.c.l.b16 %v46
    %v198 = vunpack.c.l.b16 %v47
    %v199 = vunpack.c.l.b16 %v48
    %v200 = vunpack.c.l.b16 %v49
    %v201 = vunpack.c.l.b16 %v50
    %v202 = vunpack.c.l.b16 %v51
    %v203 = vunpack.c.l.b16 %v52
    %v204 = vunpack.c.l.b16 %v53
    %v205 = vunpack.c.l.b16 %v54
    %v206 = vunpack.c.l.b16 %v55
    %v207 = vunpack.c.l.b16 %v56
    %v208 = vunpack.c.l.b16 %v57
    %v209 = vunpack.c.l.b16 %v58
    %v210 = vunpack.c.l.b16 %v59
    %v211 = vunpack.c.l.b16 %v60
    %v212 = vunpack.c.l.b16 %v61
    %v213 = vunpack.c.l.b16 %v62
    %v214 = vunpack.c.l.b16 %v63
    %v215 = vunpack.c.l.b16 %v64
    %v216 = vunpack.c.l.b16 %v65
    %v217 = vunpack.c.l.b16 %v66
    %v218 = vunpack.c.l.b16 %v67
    %v219 = vunpack.c.l.b16 %v68
    %v220 = vunpack.c.l.b16 %v69
    %v221 = vunpack.c.l.b16 %v70
    %v222 = vunpack.c.l.b16 %v71
    %v223 = vunpack.c.l.b16 %v72
    %v224 = vunpack.c.l.b16 %v73
    %v225 = vunpack.c.l.b16 %v74
    %v226 = vunpack.c.l.b16 %v75
    %v227 = vunpack.c.l.b16 %v76
    %v228 = vunpack.c.l.b16 %v77
    %v229 = vunpack.c.l.b16 %v78
    %v230 = vunpack.c.l.b16 %v79
    %v231 = vpack.c.b16 %v168, %v167
    %v232 = vpack.c.b16 %v170, %v169
    %v233 = vpack.c.b16 %v172, %v171
    %v234 = vpack.c.b16 %v174, %v173
    %v235 = vpack.c.b16 %v176, %v175
    %v236 = vpack.c.b16 %v178, %v177
    %v237 = vpack.c.b16 %v180, %v179
    %v238 = vpack.c.b16 %v182, %v181
    %v239 = vpack.c.b16 %v184, %v183
    %v240 = vpack.c.b16 %v186, %v185
    %v241 = vpack.c.b16 %v188, %v187
    %v242 = vpack.c.b16 %v190, %v189
    %v243 = vpack.c.b16 %v192, %v191
    %v244 = vpack.c.b16 %v194, %v193
    %v245 = vpack.c.b16 %v196, %v195
    %v246 = vpack.c.b16 %v198, %v197
    %v247 = vpack.c.b16 %v200, %v199
    %v248 = vpack.c.b16 %v202, %v201
    %v249 = vpack.c.b16 %v204, %v203
    %v250 = vpack.c.b16 %v206, %v205
    %v251 = vpack.c.b16 %v208, %v207
    %v252 = vpack.c.b16 %v210, %v209
    %v253 = vpack.c.b16 %v212, %v211
    %v254 = vpack.c.b16 %v214, %v213
    %v255 = vpack.c.b16 %v216, %v215
    %v256 = vpack.c.b16 %v218, %v217
    %v257 = vpack.c.b16 %v220, %v219
    %v258 = vpack.c.b16 %v222, %v221
    %v259 = vpack.c.b16 %v224, %v223
    %v260 = vpack.c.b16 %v226, %v225
    %v261 = vpack.c.b16 %v228, %v227
    %v262 = vpack.c.b16 %v230, %v229
    %v311 = vunpack.c.l.b16 %v80
    %v312 = vunpack.c.l.b16 %v81
    %v313 = vunpack.c.l.b16 %v82
    %v314 = vunpack.c.l.b16 %v83
    %v315 = vunpack.c.l.b16 %v84
    %v316 = vunpack.c.l.b16 %v85
    %v317 = vunpack.c.l.b16 %v86
    %v318 = vunpack.c.l.b16 %v87
    %v319 = vunpack.c.l.b16 %v88
    %v320 = vunpack.c.l.b16 %v89
    %v321 = vunpack.c.l.b16 %v90
    %v322 = vunpack.c.l.b16 %v91
    %v323 = vunpack.c.l.b16 %v92
    %v324 = vunpack.c.l.b16 %v93
    %v325 = vunpack.c.l.b16 %v94
    %v326 = vunpack.c.l.b16 %v95
    %v327 = vpack.c.b16 %v312, %v311
    %v328 = vpack.c.b16 %v314, %v313
    %v329 = vpack.c.b16 %v316, %v315
    %v330 = vpack.c.b16 %v318, %v317
    %v331 = vpack.c.b16 %v320, %v319
    %v332 = vpack.c.b16 %v322, %v321
    %v333 = vpack.c.b16 %v324, %v323
    %v334 = vpack.c.b16 %v326, %v325
    %343 = vmatprep.subr.bf16.mxu0 0
    %344 = vmatpush1.bf16.msra.mxu0 %v334
    %345 = vmatprep.subr.bf16.mxu0 0
    %346 = vmatpush1.bf16.msra.mxu0 %v333
    %347 = vmatprep.subr.bf16.mxu0 0
    %348 = vmatpush1.bf16.msra.mxu0 %v332
    %349 = vmatprep.subr.bf16.mxu0 0
    %350 = vmatpush1.bf16.msra.mxu0 %v331
    %351 = vmatprep.subr.bf16.mxu0 0
    %352 = vmatpush1.bf16.msra.mxu0 %v330
    %353 = vmatprep.subr.bf16.mxu0 0
    %354 = vmatpush1.bf16.msra.mxu0 %v329
    %355 = vmatprep.subr.bf16.mxu0 0
    %356 = vmatpush1.bf16.msra.mxu0 %v328
    %357 = vmatprep.subr.bf16.mxu0 0
    %358 = vmatpush1.bf16.msra.mxu0 %v327
    %359 = vmatprep.subr.bf16.mxu0 0
    %360 = vmatpush2.bf16.msra.mxu0 0
    %361 = vmatprep.subr.bf16.mxu0 0
    %362 = vmatpush2.bf16.msra.mxu0 0
    %363 = vmatprep.subr.bf16.mxu0 0
    %364 = vmatpush2.bf16.msra.mxu0 0
    %365 = vmatprep.subr.bf16.mxu0 0
    %366 = vmatpush2.bf16.msra.mxu0 0
    %367 = vmatprep.subr.bf16.mxu0 0
    %368 = vmatpush2.bf16.msra.mxu0 0
    %369 = vmatprep.subr.bf16.mxu0 0
    %370 = vmatpush2.bf16.msra.mxu0 0
    %371 = vmatprep.subr.bf16.mxu0 0
    %372 = vmatpush2.bf16.msra.mxu0 0
    %373 = vmatprep.subr.bf16.mxu0 0
    %374 = vmatpush2.bf16.msra.mxu0 0
    %375 = vmatprep.mubr.bf16.mxu0 0
    %376 = vmatmul.mubr.bf16.gmra.mxu0 %v231
    %v377 = vpop.f32.mrf.mxu0
    %v378 = vadd.f32 %v101, %v377
    %v379 = vpop.f32.mrf.mxu0
    %v380 = vpop.f32.mrf.mxu0
    %v381 = vadd.f32 %v101, %v380
    %v382 = vpop.f32.mrf.mxu0
    %383 = vmatprep.mubr.bf16.mxu0 0
    %384 = vmatmul.mubr.bf16.gmra.mxu0 %v232
    %v385 = vpop.f32.mrf.mxu0
    %v386 = vadd.f32 %v101, %v385
    %v387 = vpop.f32.mrf.mxu0
    %v388 = vpop.f32.mrf.mxu0
    %v389 = vadd.f32 %v101, %v388
    %v390 = vpop.f32.mrf.mxu0
    %391 = vmatprep.mubr.bf16.mxu0 0
    %392 = vmatmul.mubr.bf16.gmra.mxu0 %v233
    %v393 = vpop.f32.mrf.mxu0
    %v394 = vadd.f32 %v101, %v393
    %v395 = vpop.f32.mrf.mxu0
    %v396 = vpop.f32.mrf.mxu0
    %v397 = vadd.f32 %v101, %v396
    %v398 = vpop.f32.mrf.mxu0
    %399 = vmatprep.mubr.bf16.mxu0 0
    %400 = vmatmul.mubr.bf16.gmra.mxu0 %v234
    %v401 = vpop.f32.mrf.mxu0
    %v402 = vadd.f32 %v101, %v401
    %v403 = vpop.f32.mrf.mxu0
    %v404 = vpop.f32.mrf.mxu0
    %v405 = vadd.f32 %v101, %v404
    %v406 = vpop.f32.mrf.mxu0
    %407 = vmatprep.mubr.bf16.mxu0 0
    %408 = vmatmul.mubr.bf16.gmra.mxu0 %v235
    %v409 = vpop.f32.mrf.mxu0
    %v410 = vadd.f32 %v101, %v409
    %v411 = vpop.f32.mrf.mxu0
    %v412 = vpop.f32.mrf.mxu0
    %v413 = vadd.f32 %v101, %v412
    %v414 = vpop.f32.mrf.mxu0
    %415 = vmatprep.mubr.bf16.mxu0 0
    %416 = vmatmul.mubr.bf16.gmra.mxu0 %v236
    %v417 = vpop.f32.mrf.mxu0
    %v418 = vadd.f32 %v101, %v417
    %v419 = vpop.f32.mrf.mxu0
    %v420 = vpop.f32.mrf.mxu0
    %v421 = vadd.f32 %v101, %v420
    %v422 = vpop.f32.mrf.mxu0
    %423 = vmatprep.mubr.bf16.mxu0 0
    %424 = vmatmul.mubr.bf16.gmra.mxu0 %v237
    %v425 = vpop.f32.mrf.mxu0
    %v426 = vadd.f32 %v101, %v425
    %v427 = vpop.f32.mrf.mxu0
    %v428 = vpop.f32.mrf.mxu0
    %v429 = vadd.f32 %v101, %v428
    %v430 = vpop.f32.mrf.mxu0
    %431 = vmatprep.mubr.bf16.mxu0 0
    %432 = vmatmul.mubr.bf16.gmra.mxu0 %v238
    %v433 = vpop.f32.mrf.mxu0
    %v434 = vadd.f32 %v101, %v433
    %v435 = vpop.f32.mrf.mxu0
    %v436 = vpop.f32.mrf.mxu0
    %v437 = vadd.f32 %v101, %v436
    %v438 = vpop.f32.mrf.mxu0
    %439 = vmatprep.mubr.bf16.mxu0 0
    %440 = vmatmul.mubr.bf16.gmra.mxu0 %v239
    %v441 = vpop.f32.mrf.mxu0
    %v442 = vadd.f32 %v101, %v441
    %v443 = vpop.f32.mrf.mxu0
    %v444 = vpop.f32.mrf.mxu0
    %v445 = vadd.f32 %v101, %v444
    %v446 = vpop.f32.mrf.mxu0
    %447 = vmatprep.mubr.bf16.mxu0 0
    %448 = vmatmul.mubr.bf16.gmra.mxu0 %v240
    %v449 = vpop.f32.mrf.mxu0
    %v450 = vadd.f32 %v101, %v449
    %v451 = vpop.f32.mrf.mxu0
    %v452 = vpop.f32.mrf.mxu0
    %v453 = vadd.f32 %v101, %v452
    %v454 = vpop.f32.mrf.mxu0
    %455 = vmatprep.mubr.bf16.mxu0 0
    %456 = vmatmul.mubr.bf16.gmra.mxu0 %v241
    %v457 = vpop.f32.mrf.mxu0
    %v458 = vadd.f32 %v101, %v457
    %v459 = vpop.f32.mrf.mxu0
    %v460 = vpop.f32.mrf.mxu0
    %v461 = vadd.f32 %v101, %v460
    %v462 = vpop.f32.mrf.mxu0
    %463 = vmatprep.mubr.bf16.mxu0 0
    %464 = vmatmul.mubr.bf16.gmra.mxu0 %v242
    %v465 = vpop.f32.mrf.mxu0
    %v466 = vadd.f32 %v101, %v465
    %v467 = vpop.f32.mrf.mxu0
    %v468 = vpop.f32.mrf.mxu0
    %v469 = vadd.f32 %v101, %v468
    %v470 = vpop.f32.mrf.mxu0
    %471 = vmatprep.mubr.bf16.mxu0 0
    %472 = vmatmul.mubr.bf16.gmra.mxu0 %v243
    %v473 = vpop.f32.mrf.mxu0
    %v474 = vadd.f32 %v101, %v473
    %v475 = vpop.f32.mrf.mxu0
    %v476 = vpop.f32.mrf.mxu0
    %v477 = vadd.f32 %v101, %v476
    %v478 = vpop.f32.mrf.mxu0
    %479 = vmatprep.mubr.bf16.mxu0 0
    %480 = vmatmul.mubr.bf16.gmra.mxu0 %v244
    %v481 = vpop.f32.mrf.mxu0
    %v482 = vadd.f32 %v101, %v481
    %v483 = vpop.f32.mrf.mxu0
    %v484 = vpop.f32.mrf.mxu0
    %v485 = vadd.f32 %v101, %v484
    %v486 = vpop.f32.mrf.mxu0
    %487 = vmatprep.mubr.bf16.mxu0 0
    %488 = vmatmul.mubr.bf16.gmra.mxu0 %v245
    %v489 = vpop.f32.mrf.mxu0
    %v490 = vadd.f32 %v101, %v489
    %v491 = vpop.f32.mrf.mxu0
    %v492 = vpop.f32.mrf.mxu0
    %v493 = vadd.f32 %v101, %v492
    %v494 = vpop.f32.mrf.mxu0
    %495 = vmatprep.mubr.bf16.mxu0 0
    %496 = vmatmul.mubr.bf16.gmra.mxu0 %v246
    %v497 = vpop.f32.mrf.mxu0
    %v498 = vadd.f32 %v101, %v497
    %v499 = vpop.f32.mrf.mxu0
    %v500 = vpop.f32.mrf.mxu0
    %v501 = vadd.f32 %v101, %v500
    %v502 = vpop.f32.mrf.mxu0
    %503 = vmatprep.mubr.bf16.mxu0 0
    %504 = vmatmul.mubr.bf16.gmra.mxu0 %v247
    %v505 = vpop.f32.mrf.mxu0
    %v506 = vadd.f32 %v101, %v505
    %v507 = vpop.f32.mrf.mxu0
    %v508 = vpop.f32.mrf.mxu0
    %v509 = vadd.f32 %v101, %v508
    %v510 = vpop.f32.mrf.mxu0
    %511 = vmatprep.mubr.bf16.mxu0 0
    %512 = vmatmul.mubr.bf16.gmra.mxu0 %v248
    %v513 = vpop.f32.mrf.mxu0
    %v514 = vadd.f32 %v101, %v513
    %v515 = vpop.f32.mrf.mxu0
    %v516 = vpop.f32.mrf.mxu0
    %v517 = vadd.f32 %v101, %v516
    %v518 = vpop.f32.mrf.mxu0
    %519 = vmatprep.mubr.bf16.mxu0 0
    %520 = vmatmul.mubr.bf16.gmra.mxu0 %v249
    %v521 = vpop.f32.mrf.mxu0
    %v522 = vadd.f32 %v101, %v521
    %v523 = vpop.f32.mrf.mxu0
    %v524 = vpop.f32.mrf.mxu0
    %v525 = vadd.f32 %v101, %v524
    %v526 = vpop.f32.mrf.mxu0
    %527 = vmatprep.mubr.bf16.mxu0 0
    %528 = vmatmul.mubr.bf16.gmra.mxu0 %v250
    %v529 = vpop.f32.mrf.mxu0
    %v530 = vadd.f32 %v101, %v529
    %v531 = vpop.f32.mrf.mxu0
    %v532 = vpop.f32.mrf.mxu0
    %v533 = vadd.f32 %v101, %v532
    %v534 = vpop.f32.mrf.mxu0
    %535 = vmatprep.mubr.bf16.mxu0 0
    %536 = vmatmul.mubr.bf16.gmra.mxu0 %v251
    %v537 = vpop.f32.mrf.mxu0
    %v538 = vadd.f32 %v101, %v537
    %v539 = vpop.f32.mrf.mxu0
    %v540 = vpop.f32.mrf.mxu0
    %v541 = vadd.f32 %v101, %v540
    %v542 = vpop.f32.mrf.mxu0
    %543 = vmatprep.mubr.bf16.mxu0 0
    %544 = vmatmul.mubr.bf16.gmra.mxu0 %v252
    %v545 = vpop.f32.mrf.mxu0
    %v546 = vadd.f32 %v101, %v545
    %v547 = vpop.f32.mrf.mxu0
    %v548 = vpop.f32.mrf.mxu0
    %v549 = vadd.f32 %v101, %v548
    %v550 = vpop.f32.mrf.mxu0
    %551 = vmatprep.mubr.bf16.mxu0 0
    %552 = vmatmul.mubr.bf16.gmra.mxu0 %v253
    %v553 = vpop.f32.mrf.mxu0
    %v554 = vadd.f32 %v101, %v553
    %v555 = vpop.f32.mrf.mxu0
    %v556 = vpop.f32.mrf.mxu0
    %v557 = vadd.f32 %v101, %v556
    %v558 = vpop.f32.mrf.mxu0
    %559 = vmatprep.mubr.bf16.mxu0 0
    %560 = vmatmul.mubr.bf16.gmra.mxu0 %v254
    %v561 = vpop.f32.mrf.mxu0
    %v562 = vadd.f32 %v101, %v561
    %v563 = vpop.f32.mrf.mxu0
    %v564 = vpop.f32.mrf.mxu0
    %v565 = vadd.f32 %v101, %v564
    %v566 = vpop.f32.mrf.mxu0
    %567 = vmatprep.mubr.bf16.mxu0 0
    %568 = vmatmul.mubr.bf16.gmra.mxu0 %v255
    %v569 = vpop.f32.mrf.mxu0
    %v570 = vadd.f32 %v101, %v569
    %v571 = vpop.f32.mrf.mxu0
    %v572 = vpop.f32.mrf.mxu0
    %v573 = vadd.f32 %v101, %v572
    %v574 = vpop.f32.mrf.mxu0
    %575 = vmatprep.mubr.bf16.mxu0 0
    %576 = vmatmul.mubr.bf16.gmra.mxu0 %v256
    %v577 = vpop.f32.mrf.mxu0
    %v578 = vadd.f32 %v101, %v577
    %v579 = vpop.f32.mrf.mxu0
    %v580 = vpop.f32.mrf.mxu0
    %v581 = vadd.f32 %v101, %v580
    %v582 = vpop.f32.mrf.mxu0
    %583 = vmatprep.mubr.bf16.mxu0 0
    %584 = vmatmul.mubr.bf16.gmra.mxu0 %v257
    %v585 = vpop.f32.mrf.mxu0
    %v586 = vadd.f32 %v101, %v585
    %v587 = vpop.f32.mrf.mxu0
    %v588 = vpop.f32.mrf.mxu0
    %v589 = vadd.f32 %v101, %v588
    %v590 = vpop.f32.mrf.mxu0
    %591 = vmatprep.mubr.bf16.mxu0 0
    %592 = vmatmul.mubr.bf16.gmra.mxu0 %v258
    %v593 = vpop.f32.mrf.mxu0
    %v594 = vadd.f32 %v101, %v593
    %v595 = vpop.f32.mrf.mxu0
    %v596 = vpop.f32.mrf.mxu0
    %v597 = vadd.f32 %v101, %v596
    %v598 = vpop.f32.mrf.mxu0
    %599 = vmatprep.mubr.bf16.mxu0 0
    %600 = vmatmul.mubr.bf16.gmra.mxu0 %v259
    %v601 = vpop.f32.mrf.mxu0
    %v602 = vadd.f32 %v101, %v601
    %v603 = vpop.f32.mrf.mxu0
    %v604 = vpop.f32.mrf.mxu0
    %v605 = vadd.f32 %v101, %v604
    %v606 = vpop.f32.mrf.mxu0
    %607 = vmatprep.mubr.bf16.mxu0 0
    %608 = vmatmul.mubr.bf16.gmra.mxu0 %v260
    %v609 = vpop.f32.mrf.mxu0
    %v610 = vadd.f32 %v101, %v609
    %v611 = vpop.f32.mrf.mxu0
    %v612 = vpop.f32.mrf.mxu0
    %v613 = vadd.f32 %v101, %v612
    %v614 = vpop.f32.mrf.mxu0
    %615 = vmatprep.mubr.bf16.mxu0 0
    %616 = vmatmul.mubr.bf16.gmra.mxu0 %v261
    %v617 = vpop.f32.mrf.mxu0
    %v618 = vadd.f32 %v101, %v617
    %v619 = vpop.f32.mrf.mxu0
    %v620 = vpop.f32.mrf.mxu0
    %v621 = vadd.f32 %v101, %v620
    %v622 = vpop.f32.mrf.mxu0
    %623 = vmatprep.mubr.bf16.mxu0 0
    %624 = vmatmul.mubr.bf16.gmra.mxu0 %v262
    %v625 = vpop.f32.mrf.mxu0
    %v626 = vadd.f32 %v101, %v625
    %v627 = vpop.f32.mrf.mxu0
    %v628 = vpop.f32.mrf.mxu0
    %v629 = vadd.f32 %v101, %v628
    %v630 = vpop.f32.mrf.mxu0
    %631 = vdwg.mxu0
    %vm632 = vcmp.ge.f32.partialorder %v378, 0.0
    %vm633 = vcmp.ge.f32.partialorder %v381, 0.0
    %vm634 = vcmp.ge.f32.partialorder %v386, 0.0
    %vm635 = vcmp.ge.f32.partialorder %v389, 0.0
    %vm636 = vcmp.ge.f32.partialorder %v394, 0.0
    %vm637 = vcmp.ge.f32.partialorder %v397, 0.0
    %vm638 = vcmp.ge.f32.partialorder %v402, 0.0
    %vm639 = vcmp.ge.f32.partialorder %v405, 0.0
    %vm640 = vcmp.ge.f32.partialorder %v410, 0.0
    %vm641 = vcmp.ge.f32.partialorder %v413, 0.0
    %vm642 = vcmp.ge.f32.partialorder %v418, 0.0
    %vm643 = vcmp.ge.f32.partialorder %v421, 0.0
    %vm644 = vcmp.ge.f32.partialorder %v426, 0.0
    %vm645 = vcmp.ge.f32.partialorder %v429, 0.0
    %vm646 = vcmp.ge.f32.partialorder %v434, 0.0
    %vm647 = vcmp.ge.f32.partialorder %v437, 0.0
    %vm648 = vcmp.ge.f32.partialorder %v442, 0.0
    %vm649 = vcmp.ge.f32.partialorder %v445, 0.0
    %vm650 = vcmp.ge.f32.partialorder %v450, 0.0
    %vm651 = vcmp.ge.f32.partialorder %v453, 0.0
    %vm652 = vcmp.ge.f32.partialorder %v458, 0.0
    %vm653 = vcmp.ge.f32.partialorder %v461, 0.0
    %vm654 = vcmp.ge.f32.partialorder %v466, 0.0
    %vm655 = vcmp.ge.f32.partialorder %v469, 0.0
    %vm656 = vcmp.ge.f32.partialorder %v474, 0.0
    %vm657 = vcmp.ge.f32.partialorder %v477, 0.0
    %vm658 = vcmp.ge.f32.partialorder %v482, 0.0
    %vm659 = vcmp.ge.f32.partialorder %v485, 0.0
    %vm660 = vcmp.ge.f32.partialorder %v490, 0.0
    %vm661 = vcmp.ge.f32.partialorder %v493, 0.0
    %vm662 = vcmp.ge.f32.partialorder %v498, 0.0
    %vm663 = vcmp.ge.f32.partialorder %v501, 0.0
    %vm664 = vcmp.ge.f32.partialorder %v506, 0.0
    %vm665 = vcmp.ge.f32.partialorder %v509, 0.0
    %vm666 = vcmp.ge.f32.partialorder %v514, 0.0
    %vm667 = vcmp.ge.f32.partialorder %v517, 0.0
    %vm668 = vcmp.ge.f32.partialorder %v522, 0.0
    %vm669 = vcmp.ge.f32.partialorder %v525, 0.0
    %vm670 = vcmp.ge.f32.partialorder %v530, 0.0
    %vm671 = vcmp.ge.f32.partialorder %v533, 0.0
    %vm672 = vcmp.ge.f32.partialorder %v538, 0.0
    %vm673 = vcmp.ge.f32.partialorder %v541, 0.0
    %vm674 = vcmp.ge.f32.partialorder %v546, 0.0
    %vm675 = vcmp.ge.f32.partialorder %v549, 0.0
    %vm676 = vcmp.ge.f32.partialorder %v554, 0.0
    %vm677 = vcmp.ge.f32.partialorder %v557, 0.0
    %vm678 = vcmp.ge.f32.partialorder %v562, 0.0
    %vm679 = vcmp.ge.f32.partialorder %v565, 0.0
    %vm680 = vcmp.ge.f32.partialorder %v570, 0.0
    %vm681 = vcmp.ge.f32.partialorder %v573, 0.0
    %vm682 = vcmp.ge.f32.partialorder %v578, 0.0
    %vm683 = vcmp.ge.f32.partialorder %v581, 0.0
    %vm684 = vcmp.ge.f32.partialorder %v586, 0.0
    %vm685 = vcmp.ge.f32.partialorder %v589, 0.0
    %vm686 = vcmp.ge.f32.partialorder %v594, 0.0
    %vm687 = vcmp.ge.f32.partialorder %v597, 0.0
    %vm688 = vcmp.ge.f32.partialorder %v602, 0.0
    %vm689 = vcmp.ge.f32.partialorder %v605, 0.0
    %vm690 = vcmp.ge.f32.partialorder %v610, 0.0
    %vm691 = vcmp.ge.f32.partialorder %v613, 0.0
    %vm692 = vcmp.ge.f32.partialorder %v618, 0.0
    %vm693 = vcmp.ge.f32.partialorder %v621, 0.0
    %vm694 = vcmp.ge.f32.partialorder %v626, 0.0
    %vm695 = vcmp.ge.f32.partialorder %v629, 0.0
    %v696 = vmul.f32 %v378, 0.2
    %v697 = vmul.f32 %v381, 0.2
    %v698 = vmul.f32 %v386, 0.2
    %v699 = vmul.f32 %v389, 0.2
    %v700 = vmul.f32 %v394, 0.2
    %v701 = vmul.f32 %v397, 0.2
    %v702 = vmul.f32 %v402, 0.2
    %v703 = vmul.f32 %v405, 0.2
    %v704 = vmul.f32 %v410, 0.2
    %v705 = vmul.f32 %v413, 0.2
    %v706 = vmul.f32 %v418, 0.2
    %v707 = vmul.f32 %v421, 0.2
    %v708 = vmul.f32 %v426, 0.2
    %v709 = vmul.f32 %v429, 0.2
    %v710 = vmul.f32 %v434, 0.2
    %v711 = vmul.f32 %v437, 0.2
    %v712 = vmul.f32 %v442, 0.2
    %v713 = vmul.f32 %v445, 0.2
    %v714 = vmul.f32 %v450, 0.2
    %v715 = vmul.f32 %v453, 0.2
    %v716 = vmul.f32 %v458, 0.2
    %v717 = vmul.f32 %v461, 0.2
    %v718 = vmul.f32 %v466, 0.2
    %v719 = vmul.f32 %v469, 0.2
    %v720 = vmul.f32 %v474, 0.2
    %v721 = vmul.f32 %v477, 0.2
    %v722 = vmul.f32 %v482, 0.2
    %v723 = vmul.f32 %v485, 0.2
    %v724 = vmul.f32 %v490, 0.2
    %v725 = vmul.f32 %v493, 0.2
    %v726 = vmul.f32 %v498, 0.2
    %v727 = vmul.f32 %v501, 0.2
    %v728 = vmul.f32 %v506, 0.2
    %v729 = vmul.f32 %v509, 0.2
    %v730 = vmul.f32 %v514, 0.2
    %v731 = vmul.f32 %v517, 0.2
    %v732 = vmul.f32 %v522, 0.2
    %v733 = vmul.f32 %v525, 0.2
    %v734 = vmul.f32 %v530, 0.2
    %v735 = vmul.f32 %v533, 0.2
    %v736 = vmul.f32 %v538, 0.2
    %v737 = vmul.f32 %v541, 0.2
    %v738 = vmul.f32 %v546, 0.2
    %v739 = vmul.f32 %v549, 0.2
    %v740 = vmul.f32 %v554, 0.2
    %v741 = vmul.f32 %v557, 0.2
    %v742 = vmul.f32 %v562, 0.2
    %v743 = vmul.f32 %v565, 0.2
    %v744 = vmul.f32 %v570, 0.2
    %v745 = vmul.f32 %v573, 0.2
    %v746 = vmul.f32 %v578, 0.2
    %v747 = vmul.f32 %v581, 0.2
    %v748 = vmul.f32 %v586, 0.2
    %v749 = vmul.f32 %v589, 0.2
    %v750 = vmul.f32 %v594, 0.2
    %v751 = vmul.f32 %v597, 0.2
    %v752 = vmul.f32 %v602, 0.2
    %v753 = vmul.f32 %v605, 0.2
    %v754 = vmul.f32 %v610, 0.2
    %v755 = vmul.f32 %v613, 0.2
    %v756 = vmul.f32 %v618, 0.2
    %v757 = vmul.f32 %v621, 0.2
    %v758 = vmul.f32 %v626, 0.2
    %v759 = vmul.f32 %v629, 0.2
    %v760 = vsel %vm632, %v378, %v696
    %v761 = vsel %vm633, %v381, %v697
    %v762 = vsel %vm634, %v386, %v698
    %v763 = vsel %vm635, %v389, %v699
    %v764 = vsel %vm636, %v394, %v700
    %v765 = vsel %vm637, %v397, %v701
    %v766 = vsel %vm638, %v402, %v702
    %v767 = vsel %vm639, %v405, %v703
    %v768 = vsel %vm640, %v410, %v704
    %v769 = vsel %vm641, %v413, %v705
    %v770 = vsel %vm642, %v418, %v706
    %v771 = vsel %vm643, %v421, %v707
    %v772 = vsel %vm644, %v426, %v708
    %v773 = vsel %vm645, %v429, %v709
    %v774 = vsel %vm646, %v434, %v710
    %v775 = vsel %vm647, %v437, %v711
    %v776 = vsel %vm648, %v442, %v712
    %v777 = vsel %vm649, %v445, %v713
    %v778 = vsel %vm650, %v450, %v714
    %v779 = vsel %vm651, %v453, %v715
    %v780 = vsel %vm652, %v458, %v716
    %v781 = vsel %vm653, %v461, %v717
    %v782 = vsel %vm654, %v466, %v718
    %v783 = vsel %vm655, %v469, %v719
    %v784 = vsel %vm656, %v474, %v720
    %v785 = vsel %vm657, %v477, %v721
    %v786 = vsel %vm658, %v482, %v722
    %v787 = vsel %vm659, %v485, %v723
    %v788 = vsel %vm660, %v490, %v724
    %v789 = vsel %vm661, %v493, %v725
    %v790 = vsel %vm662, %v498, %v726
    %v791 = vsel %vm663, %v501, %v727
    %v792 = vsel %vm664, %v506, %v728
    %v793 = vsel %vm665, %v509, %v729
    %v794 = vsel %vm666, %v514, %v730
    %v795 = vsel %vm667, %v517, %v731
    %v796 = vsel %vm668, %v522, %v732
    %v797 = vsel %vm669, %v525, %v733
    %v798 = vsel %vm670, %v530, %v734
    %v799 = vsel %vm671, %v533, %v735
    %v800 = vsel %vm672, %v538, %v736
    %v801 = vsel %vm673, %v541, %v737
    %v802 = vsel %vm674, %v546, %v738
    %v803 = vsel %vm675, %v549, %v739
    %v804 = vsel %vm676, %v554, %v740
    %v805 = vsel %vm677, %v557, %v741
    %v806 = vsel %vm678, %v562, %v742
    %v807 = vsel %vm679, %v565, %v743
    %v808 = vsel %vm680, %v570, %v744
    %v809 = vsel %vm681, %v573, %v745
    %v810 = vsel %vm682, %v578, %v746
    %v811 = vsel %vm683, %v581, %v747
    %v812 = vsel %vm684, %v586, %v748
    %v813 = vsel %vm685, %v589, %v749
    %v814 = vsel %vm686, %v594, %v750
    %v815 = vsel %vm687, %v597, %v751
    %v816 = vsel %vm688, %v602, %v752
    %v817 = vsel %vm689, %v605, %v753
    %v818 = vsel %vm690, %v610, %v754
    %v819 = vsel %vm691, %v613, %v755
    %v820 = vsel %vm692, %v618, %v756
    %v821 = vsel %vm693, %v621, %v757
    %v822 = vsel %vm694, %v626, %v758
    %v823 = vsel %vm695, %v629, %v759
    %824 = vst [vmem:[#allocation2] sm:$0xff] %v760
    %825 = vst [vmem:[#allocation2 + $0x8] sm:$0xff] %v761
    %826 = vst [vmem:[#allocation2 + $0x10] sm:$0xff] %v762
    %827 = vst [vmem:[#allocation2 + $0x18] sm:$0xff] %v763
    %828 = vst [vmem:[#allocation2 + $0x20] sm:$0xff] %v764
    %829 = vst [vmem:[#allocation2 + $0x28] sm:$0xff] %v765
    %830 = vst [vmem:[#allocation2 + $0x30] sm:$0xff] %v766
    %831 = vst [vmem:[#allocation2 + $0x38] sm:$0xff] %v767
    %832 = vst [vmem:[#allocation2 + $0x40] sm:$0xff] %v768
    %833 = vst [vmem:[#allocation2 + $0x48] sm:$0xff] %v769
    %834 = vst [vmem:[#allocation2 + $0x50] sm:$0xff] %v770
    %835 = vst [vmem:[#allocation2 + $0x58] sm:$0xff] %v771
    %836 = vst [vmem:[#allocation2 + $0x60] sm:$0xff] %v772
    %837 = vst [vmem:[#allocation2 + $0x68] sm:$0xff] %v773
    %838 = vst [vmem:[#allocation2 + $0x70] sm:$0xff] %v774
    %839 = vst [vmem:[#allocation2 + $0x78] sm:$0xff] %v775
    %840 = vst [vmem:[#allocation2 + $0x80] sm:$0xff] %v776
    %841 = vst [vmem:[#allocation2 + $0x88] sm:$0xff] %v777
    %842 = vst [vmem:[#allocation2 + $0x90] sm:$0xff] %v778
    %843 = vst [vmem:[#allocation2 + $0x98] sm:$0xff] %v779
    %844 = vst [vmem:[#allocation2 + $0xa0] sm:$0xff] %v780
    %845 = vst [vmem:[#allocation2 + $0xa8] sm:$0xff] %v781
    %846 = vst [vmem:[#allocation2 + $0xb0] sm:$0xff] %v782
    %847 = vst [vmem:[#allocation2 + $0xb8] sm:$0xff] %v783
    %848 = vst [vmem:[#allocation2 + $0xc0] sm:$0xff] %v784
    %849 = vst [vmem:[#allocation2 + $0xc8] sm:$0xff] %v785
    %850 = vst [vmem:[#allocation2 + $0xd0] sm:$0xff] %v786
    %851 = vst [vmem:[#allocation2 + $0xd8] sm:$0xff] %v787
    %852 = vst [vmem:[#allocation2 + $0xe0] sm:$0xff] %v788
    %853 = vst [vmem:[#allocation2 + $0xe8] sm:$0xff] %v789
    %854 = vst [vmem:[#allocation2 + $0xf0] sm:$0xff] %v790
    %855 = vst [vmem:[#allocation2 + $0xf8] sm:$0xff] %v791
    %856 = vst [vmem:[#allocation2 + $0x100] sm:$0xff] %v792
    %857 = vst [vmem:[#allocation2 + $0x108] sm:$0xff] %v793
    %858 = vst [vmem:[#allocation2 + $0x110] sm:$0xff] %v794
    %859 = vst [vmem:[#allocation2 + $0x118] sm:$0xff] %v795
    %860 = vst [vmem:[#allocation2 + $0x120] sm:$0xff] %v796
    %861 = vst [vmem:[#allocation2 + $0x128] sm:$0xff] %v797
    %862 = vst [vmem:[#allocation2 + $0x130] sm:$0xff] %v798
    %863 = vst [vmem:[#allocation2 + $0x138] sm:$0xff] %v799
    %864 = vst [vmem:[#allocation2 + $0x140] sm:$0xff] %v800
    %865 = vst [vmem:[#allocation2 + $0x148] sm:$0xff] %v801
    %866 = vst [vmem:[#allocation2 + $0x150] sm:$0xff] %v802
    %867 = vst [vmem:[#allocation2 + $0x158] sm:$0xff] %v803
    %868 = vst [vmem:[#allocation2 + $0x160] sm:$0xff] %v804
    %869 = vst [vmem:[#allocation2 + $0x168] sm:$0xff] %v805
    %870 = vst [vmem:[#allocation2 + $0x170] sm:$0xff] %v806
    %871 = vst [vmem:[#allocation2 + $0x178] sm:$0xff] %v807
    %872 = vst [vmem:[#allocation2 + $0x180] sm:$0xff] %v808
    %873 = vst [vmem:[#allocation2 + $0x188] sm:$0xff] %v809
    %874 = vst [vmem:[#allocation2 + $0x190] sm:$0xff] %v810
    %875 = vst [vmem:[#allocation2 + $0x198] sm:$0xff] %v811
    %876 = vst [vmem:[#allocation2 + $0x1a0] sm:$0xff] %v812
    %877 = vst [vmem:[#allocation2 + $0x1a8] sm:$0xff] %v813
    %878 = vst [vmem:[#allocation2 + $0x1b0] sm:$0xff] %v814
    %879 = vst [vmem:[#allocation2 + $0x1b8] sm:$0xff] %v815
    %880 = vst [vmem:[#allocation2 + $0x1c0] sm:$0xff] %v816
    %881 = vst [vmem:[#allocation2 + $0x1c8] sm:$0xff] %v817
    %882 = vst [vmem:[#allocation2 + $0x1d0] sm:$0xff] %v818
    %883 = vst [vmem:[#allocation2 + $0x1d8] sm:$0xff] %v819
    %884 = vst [vmem:[#allocation2 + $0x1e0] sm:$0xff] %v820
    %885 = vst [vmem:[#allocation2 + $0x1e8] sm:$0xff] %v821
    %886 = vst [vmem:[#allocation2 + $0x1f0] sm:$0xff] %v822
    %887 = vst [vmem:[#allocation2 + $0x1f8] sm:$0xff] %v823
    // Predicated region
    $region14: #{conv2d_fused.1} parent=1 // pred_check
      _
    $region15: #{conv2d_fused.1} parent=1 // pred_check_branch
      %889 = sbr.rel (0) target = $region17
    $region16: #{conv2d_fused.1} parent=1 // pred_region
      %s891 = ssub.s32 8192, 8192
      %892 = vsyncadd [#allocation3], %s891
      %s893 = sshll.u32 [#allocation2], 4
      %s894 = int_to_ptr.vmem [resolvable:$true] %s893
      %899 = dma.vmem_to_hbm [thread:$0]  %s894, 8192, %s3, [#allocation3], 128, 128, 8
    $region17: #{conv2d_fused.1} parent=1 // pred_fallthru
      _
    // Predicated region
    $region18: #{conv2d_fused.1} parent=1 // pred_check
      _
    $region19: #{conv2d_fused.1} parent=1 // pred_check_branch
      %901 = sbr.rel (0) target = $region21
    $region20: #{conv2d_fused.1} parent=1 // pred_region
      %902 = dma.done [#allocation3], 8192
    $region21: #{conv2d_fused.1} parent=1 // pred_fallthru
      _
    %903 = vsyncpa [#allocation3], 1

</llo_original>
